<compile_context>
chip_gen: v7x
topology: tpu7x:2x2x1
jax: 0.10.0
libtpu: 0.0.40
codegen_flags: <defaults>
</compile_context>

<pallas_src>
import functools
import math

import jax
import jax.numpy as jnp
from jax import lax
from jax.experimental import pallas as pl
from jax.experimental.pallas import tpu as pltpu

_SQRT_2_OVER_PI = math.sqrt(2.0 / math.pi)
_INV_SQRT2 = 1.0 / math.sqrt(2.0)


def _round_up(n, m):
    return (n + m - 1) // m * m


def _vmem_capacity_bytes():
    try:
        return int(pltpu.get_tpu_info().vmem_capacity_bytes)
    except Exception:
        return 64 * 1024 * 1024  # conservative: v7x per-TensorCore VMEM


def _gelu(h, approximate):
    if approximate:
        # tanh-approx GELU: transcendental goes to the otherwise-idle EUP slot.
        # Opt-in fast path for VALU-bound shapes on v6e/v7x (~1e-3 vs erf).
        return 0.5 * h * (1.0 + jnp.tanh(_SQRT_2_OVER_PI * (h + 0.044715 * (h * h * h))))
    # Exact erf GELU — matches the HuggingFace/PyTorch reference (default).
    return h * 0.5 * (1.0 + lax.erf(h * _INV_SQRT2))


def _ffn_kernel_resident(x_ref, w1_ref, b1_ref, w2_ref, b2_ref, o_ref, *,
                         approximate_gelu, d_ff_chunk):
    """Weights fully VMEM-resident.  No accumulator scratch: fc2 writes o_ref
    directly.  Optionally chunks fc1->GELU->fc2 over d_ff inside the kernel so
    the f32 h temporary stays bounded without re-streaming weights from HBM."""
    d_ff = w1_ref.shape[1]
    x = x_ref[...]
    b2 = b2_ref[...].astype(jnp.float32)

    if d_ff_chunk >= d_ff:
        h = jnp.dot(x, w1_ref[...], preferred_element_type=jnp.float32)
        h = _gelu(h + b1_ref[...].astype(jnp.float32), approximate_gelu)
        out = jnp.dot(h.astype(w2_ref.dtype), w2_ref[...],
                      preferred_element_type=jnp.float32)
    else:
        n_chunks = d_ff // d_ff_chunk

        def body(j, acc):
            off = pl.multiple_of(j * d_ff_chunk, 128)
            w1c = w1_ref[:, pl.ds(off, d_ff_chunk)]
            b1c = b1_ref[:, pl.ds(off, d_ff_chunk)].astype(jnp.float32)
            w2c = w2_ref[pl.ds(off, d_ff_chunk), :]
            h = jnp.dot(x, w1c, preferred_element_type=jnp.float32)
            h = _gelu(h + b1c, approximate_gelu)
            return acc + jnp.dot(h.astype(w2c.dtype), w2c,
                                 preferred_element_type=jnp.float32)

        out = lax.fori_loop(0, n_chunks, body,
                            jnp.zeros((x.shape[0], o_ref.shape[1]), jnp.float32))

    o_ref[...] = (out + b2).astype(o_ref.dtype)


def _ffn_kernel_tiled(x_ref, w1_ref, b1_ref, w2_ref, b2_ref, o_ref, acc_ref, *,
                      approximate_gelu):
    """Weight-streaming path: grid = (row tiles [parallel], d_ff tiles
    [arbitrary, last]).  Partial fc2 products accumulate in an f32 scratch;
    the output tile is written once on the final d_ff step."""
    k = pl.program_id(1)

    @pl.when(k == 0)
    def _():
        acc_ref[...] = jnp.zeros_like(acc_ref)

    h = jnp.dot(x_ref[...], w1_ref[...], preferred_element_type=jnp.float32)
    h = _gelu(h + b1_ref[...].astype(jnp.float32), approximate_gelu)
    acc_ref[...] += jnp.dot(h.astype(w2_ref.dtype), w2_ref[...],
                            preferred_element_type=jnp.float32)

    @pl.when(k == pl.num_programs(1) - 1)
    def _():
        o_ref[...] = (acc_ref[...] + b2_ref[...].astype(jnp.float32)).astype(o_ref.dtype)


def _pick_row_tile(M, tm):
    """Balanced row tile: multiple of 8, padding waste bounded (<8 rows), and
    >= 2 tiles when there is enough work so the 'parallel' row axis can shard
    across both TensorCores on v7x."""
    if M <= tm:
        if M >= 256:
            return max(_round_up(pl.cdiv(M, 2), 8), 8)
        return max(_round_up(M, 8), 8)
    n_tiles = max(pl.cdiv(M, tm), 2)
    return max(_round_up(pl.cdiv(M, n_tiles), 8), 8)


def poswise_ffn(x, w1, b1, w2, b2, *, tm=None, d_ff_tile=None, d_ff_chunk=None,
                approximate_gelu=False, vmem_limit_bytes=None):
    """x: [batch, seq, d_model]; w1: [d_model, d_ff]; b1: [d_ff];
    w2: [d_ff, d_model]; b2: [d_model]."""
    batch, seq, d_model = x.shape
    d_ff = w1.shape[1]
    assert w1.shape == (d_model, d_ff) and w2.shape == (d_ff, d_model)
    assert b1.shape == (d_ff,) and b2.shape == (d_model,)

    M = batch * seq
    x2d = x.reshape(M, d_model)        # no host-side padding: grid uses cdiv and
    b1_2d = b1.reshape(1, d_ff)        # Pallas clips the ragged last block.
    b2_2d = b2.reshape(1, d_model)

    x_bytes = jnp.dtype(x.dtype).itemsize
    w_bytes = jnp.dtype(w1.dtype).itemsize
    vmem_cap = _vmem_capacity_bytes()
    budget = int(0.8 * vmem_cap)

    if tm is None:
        # Bigger row tiles amortize per-step overhead / output DMAs on the
        # 128 MiB parts (v5e/v6e); stay at 256 under v7x's 64 MiB budget.
        tm = 512 if vmem_cap >= (96 << 20) else 256
    tm_eff = _pick_row_tile(M, tm)

    # --- conservative VMEM footprint estimates (double-buffered operands) ---
    def resident_fp(tm_, chunk):
        wgt = (2 * d_model * d_ff + d_ff + d_model) * w_bytes * 2
        io = 2 * tm_ * d_model * x_bytes * 2          # x + out tiles
        h_tmp = 2 * tm_ * chunk * 4                   # f32 h (+ gelu temp)
        return wgt + io + h_tmp + (2 << 20)

    def tiled_fp(tm_, tf_):
        wgt = (2 * d_model * tf_ + tf_ + d_model) * w_bytes * 2
        io = 2 * tm_ * d_model * x_bytes * 2
        acc = tm_ * d_model * 4
        h_tmp = 2 * tm_ * tf_ * 4
        return wgt + io + acc + h_tmp + (2 << 20)

    force_tiled = d_ff_tile is not None
    tf = d_ff_tile

    if not force_tiled and d_ff_chunk is None:
        if resident_fp(tm_eff, d_ff) <= budget:
            d_ff_chunk = d_ff
        else:
            for c in (1024, 512, 256, 128):
                if c < d_ff and d_ff % c == 0 and resident_fp(tm_eff, c) <= budget:
                    d_ff_chunk = c
                    break
            if d_ff_chunk is None:
                force_tiled = True      # resident weights don't fit even chunked
    if not force_tiled and d_ff_chunk is not None and d_ff_chunk < d_ff:
        assert d_ff % d_ff_chunk == 0 and d_ff_chunk % 128 == 0, "bad d_ff_chunk"

    if force_tiled:
        if tf is None:
            # Weights are re-streamed from HBM once per row tile, so minimize
            # the number of row tiles first, then pick the largest fitting tf.
            chosen = None
            row_cap = _round_up(M, 8)
            for tm_c in (1024, 768, 512, 384, 256, 192, 128, 64, 32, 16, 8):
                if tm_c > row_cap:
                    continue
                for tf_c in (1024, 768, 512, 384, 256, 128):
                    if tf_c <= d_ff and d_ff % tf_c == 0 and tiled_fp(tm_c, tf_c) <= budget:
                        chosen = (tm_c, tf_c)
                        break
                if chosen is not None:
                    break
            if chosen is None:
                chosen = (min(row_cap, 256), 128)
            tm_eff, tf = chosen
        assert tf == d_ff or (d_ff % tf == 0 and tf % 128 == 0), "bad d_ff tile"

    n_row_tiles = pl.cdiv(M, tm_eff)
    restream = n_row_tiles if force_tiled else 1
    weight_bytes = (2 * d_model * d_ff + d_ff + d_model) * w_bytes
    cost = pl.CostEstimate(
        flops=4 * M * d_model * d_ff,                 # two matmuls
        transcendentals=M * d_ff,                     # one gelu per h element
        bytes_accessed=int(2 * M * d_model * x_bytes + weight_bytes * restream))

    fp = tiled_fp(tm_eff, tf) if force_tiled else resident_fp(tm_eff, min(d_ff_chunk, d_ff))
    if vmem_limit_bytes is None:
        vmem_limit_bytes = min(max(fp + (8 << 20), 32 << 20), int(0.95 * vmem_cap))

    if force_tiled:
        kernel = functools.partial(_ffn_kernel_tiled,
                                   approximate_gelu=approximate_gelu)
        grid = (n_row_tiles, d_ff // tf)
        grid_spec = pltpu.PrefetchScalarGridSpec(
            num_scalar_prefetch=0,
            grid=grid,
            in_specs=[
                pl.BlockSpec((tm_eff, d_model), lambda i, k: (i, 0)),   # x rows
                pl.BlockSpec((d_model, tf), lambda i, k: (0, k)),       # W1 slice
                pl.BlockSpec((1, tf), lambda i, k: (0, k)),             # b1 slice
                pl.BlockSpec((tf, d_model), lambda i, k: (k, 0)),       # W2 slice
                pl.BlockSpec((1, d_model), lambda i, k: (0, 0)),        # b2
            ],
            out_specs=pl.BlockSpec((tm_eff, d_model), lambda i, k: (i, 0)),
            scratch_shapes=[pltpu.VMEM((tm_eff, d_model), jnp.float32)],
        )
        dim_sem = ("parallel", "arbitrary")
    else:
        kernel = functools.partial(_ffn_kernel_resident,
                                   approximate_gelu=approximate_gelu,
                                   d_ff_chunk=int(min(d_ff_chunk, d_ff)))
        grid = (n_row_tiles,)
        grid_spec = pltpu.PrefetchScalarGridSpec(
            num_scalar_prefetch=0,
            grid=grid,
            in_specs=[
                pl.BlockSpec((tm_eff, d_model), lambda i: (i, 0)),      # x rows
                pl.BlockSpec((d_model, d_ff), lambda i: (0, 0)),        # W1 (resident)
                pl.BlockSpec((1, d_ff), lambda i: (0, 0)),              # b1
                pl.BlockSpec((d_ff, d_model), lambda i: (0, 0)),        # W2 (resident)
                pl.BlockSpec((1, d_model), lambda i: (0, 0)),           # b2
            ],
            out_specs=pl.BlockSpec((tm_eff, d_model), lambda i: (i, 0)),
        )
        dim_sem = ("parallel",)

    out2d = pl.pallas_call(
        kernel,
        out_shape=jax.ShapeDtypeStruct((M, d_model), x.dtype),
        grid_spec=grid_spec,
        compiler_params=pltpu.CompilerParams(
            dimension_semantics=dim_sem,
            vmem_limit_bytes=int(vmem_limit_bytes)),
        cost_estimate=cost,
    )(x2d, w1, b1_2d, w2, b2_2d)

    return out2d.reshape(batch, seq, d_model)


def _reference(x, w1, b1, w2, b2, approximate_gelu=False):
    h = jnp.einsum("bsd,df->bsf", x, w1) + b1
    if approximate_gelu:
        h = 0.5 * h * (1.0 + jnp.tanh(_SQRT_2_OVER_PI * (h + 0.044715 * (h * h * h))))
    else:
        h = h * 0.5 * (1.0 + lax.erf(h * _INV_SQRT2))
    return jnp.einsum("bsf,fd->bsd", h, w2) + b2


if __name__ == "__main__":
    # Small shapes consistent with the module (d_ff = 4 * d_model).
    batch, seq, d_model, d_ff = 2, 8, 64, 256

    key = jax.random.PRNGKey(0)
    kx, kw1, kb1, kw2, kb2 = jax.random.split(key, 5)

    x = jax.random.normal(kx, (batch, seq, d_model), dtype=jnp.float32)
    w1 = jax.random.normal(kw1, (d_model, d_ff), dtype=jnp.float32) / math.sqrt(d_model)
    b1 = jax.random.normal(kb1, (d_ff,), dtype=jnp.float32) * 0.02
    w2 = jax.random.normal(kw2, (d_ff, d_model), dtype=jnp.float32) / math.sqrt(d_ff)
    b2 = jax.random.normal(kb2, (d_model,), dtype=jnp.float32) * 0.02

    ref = _reference(x, w1, b1, w2, b2)

    # 1) resident fast path (no accumulator scratch, single matmul pair).
    out = jax.block_until_ready(poswise_ffn(x, w1, b1, w2, b2))
    assert out.shape == (batch, seq, d_model)
    assert jnp.allclose(out, ref, atol=1e-4, rtol=1e-4)

    # 2) resident path with in-kernel d_ff chunking (bounded h temporary).
    out_c = jax.block_until_ready(poswise_ffn(x, w1, b1, w2, b2, d_ff_chunk=128))
    assert jnp.allclose(out_c, ref, atol=1e-4, rtol=1e-4)

    # 3) weight-streaming (d_ff-tiled accumulator) path + ragged row count.
    x_r = x[:, :7, :]
    out_r = jax.block_until_ready(poswise_ffn(x_r, w1, b1, w2, b2, d_ff_tile=128))
    ref_r = _reference(x_r, w1, b1, w2, b2)
    assert jnp.allclose(out_r, ref_r, atol=1e-4, rtol=1e-4)

    # 4) bf16 operands straight into the MXU (f32 accumulation).
    xb, w1b, b1b, w2b, b2b = (a.astype(jnp.bfloat16) for a in (x, w1, b1, w2, b2))
    out_b = jax.block_until_ready(poswise_ffn(xb, w1b, b1b, w2b, b2b))
    ref_b = _reference(*(a.astype(jnp.float32) for a in (xb, w1b, b1b, w2b, b2b)))
    assert out_b.dtype == jnp.bfloat16
    assert jnp.allclose(out_b.astype(jnp.float32), ref_b, atol=7.5e-2, rtol=7.5e-2)

    # 5) optional tanh-approx GELU (EUP slot) fast path.
    out_t = jax.block_until_ready(poswise_ffn(x, w1, b1, w2, b2, approximate_gelu=True))
    ref_t = _reference(x, w1, b1, w2, b2, approximate_gelu=True)
    assert jnp.allclose(out_t, ref_t, atol=5e-3, rtol=5e-3)

    print("KERNEL_OK")
</pallas_src>

<mosaic_0001>
module attributes {stable_mosaic.version = 11 : i64} {
  func.func @_ffn_kernel_resident(%arg0: i32, %arg1: memref<16x64xf32, #tpu.memory_space<vmem>>, %arg2: memref<64x256xf32, #tpu.memory_space<vmem>>, %arg3: memref<1x256xf32, #tpu.memory_space<vmem>>, %arg4: memref<256x64xf32, #tpu.memory_space<vmem>>, %arg5: memref<1x64xf32, #tpu.memory_space<vmem>>, %arg6: memref<16x64xf32, #tpu.memory_space<vmem>>) attributes {dimension_semantics = [#tpu.dimension_semantics<parallel>], iteration_bounds = array<i64: 1>, scalar_prefetch = 0 : i64, scratch_operands = 0 : i64, tpu.core_type = #tpu.core_type<tc>, window_params = [{transform_indices = @transform_0, window_bounds = array<i64: 16, 64>}, {pipeline_mode = #tpu.pipeline_mode<synchronous>, transform_indices = @transform_1, window_bounds = array<i64: 64, 256>}, {pipeline_mode = #tpu.pipeline_mode<synchronous>, transform_indices = @transform_2, window_bounds = array<i64: 1, 256>}, {pipeline_mode = #tpu.pipeline_mode<synchronous>, transform_indices = @transform_3, window_bounds = array<i64: 256, 64>}, {pipeline_mode = #tpu.pipeline_mode<synchronous>, transform_indices = @transform_4, window_bounds = array<i64: 1, 64>}, {transform_indices = @transform_5, window_bounds = array<i64: 16, 64>}]} {
    %c0 = arith.constant 0 : index
    %c0_0 = arith.constant 0 : index
    %0 = vector.load %arg1[%c0, %c0_0] : memref<16x64xf32, #tpu.memory_space<vmem>>, vector<16x64xf32>
    %c0_1 = arith.constant 0 : index
    %c0_2 = arith.constant 0 : index
    %1 = vector.load %arg5[%c0_1, %c0_2] : memref<1x64xf32, #tpu.memory_space<vmem>>, vector<1x64xf32>
    %c0_3 = arith.constant 0 : index
    %c0_4 = arith.constant 0 : index
    %2 = vector.load %arg2[%c0_3, %c0_4] : memref<64x256xf32, #tpu.memory_space<vmem>>, vector<64x256xf32>
    %cst = arith.constant dense<0.000000e+00> : vector<16x256xf32>
    %3 = tpu.matmul %0, %2, %cst {dimension_numbers = #tpu.dot_dimension_numbers<[1], [0], [0], [1], [0, 0, 1, 1], [], []>} : vector<16x64xf32>, vector<64x256xf32>, vector<16x256xf32> -> vector<16x256xf32>
    %c0_5 = arith.constant 0 : index
    %c0_6 = arith.constant 0 : index
    %4 = vector.load %arg3[%c0_5, %c0_6] : memref<1x256xf32, #tpu.memory_space<vmem>>, vector<1x256xf32>
    %5 = vector.broadcast %4 : vector<1x256xf32> to vector<16x256xf32>
    %6 = arith.addf %3, %5 : vector<16x256xf32>
    %cst_7 = arith.constant 5.000000e-01 : f32
    %7 = vector.broadcast %cst_7 : f32 to vector<16x256xf32>
    %8 = arith.mulf %6, %7 : vector<16x256xf32>
    %cst_8 = arith.constant 0.707106769 : f32
    %9 = vector.broadcast %cst_8 : f32 to vector<16x256xf32>
    %10 = arith.mulf %6, %9 : vector<16x256xf32>
    %11 = math.erf %10 : vector<16x256xf32>
    %cst_9 = arith.constant 1.000000e+00 : f32
    %12 = vector.broadcast %cst_9 : f32 to vector<16x256xf32>
    %13 = arith.addf %12, %11 : vector<16x256xf32>
    %14 = arith.mulf %8, %13 : vector<16x256xf32>
    %c0_10 = arith.constant 0 : index
    %c0_11 = arith.constant 0 : index
    %15 = vector.load %arg4[%c0_10, %c0_11] : memref<256x64xf32, #tpu.memory_space<vmem>>, vector<256x64xf32>
    %cst_12 = arith.constant dense<0.000000e+00> : vector<16x64xf32>
    %16 = tpu.matmul %14, %15, %cst_12 {dimension_numbers = #tpu.dot_dimension_numbers<[1], [0], [0], [1], [0, 0, 1, 1], [], []>} : vector<16x256xf32>, vector<256x64xf32>, vector<16x64xf32> -> vector<16x64xf32>
    %17 = vector.broadcast %1 : vector<1x64xf32> to vector<16x64xf32>
    %18 = arith.addf %16, %17 : vector<16x64xf32>
    %c0_13 = arith.constant 0 : index
    %c0_14 = arith.constant 0 : index
    %19 = vector.load %arg6[%c0_13, %c0_14] : memref<16x64xf32, #tpu.memory_space<vmem>>, vector<16x64xf32>
    tpu.vector_store %arg6[%c0_13, %c0_14], %18 {strides = array<i32>} : memref<16x64xf32, #tpu.memory_space<vmem>>, vector<16x64xf32>,
    return
  }
  func.func @transform_0(%arg0: i32) -> (i32, i32) {
    %c0_i32 = arith.constant 0 : i32
    %c0_i32_0 = arith.constant 0 : i32
    return %arg0, %c0_i32 : i32, i32
  }
  func.func @transform_1(%arg0: i32) -> (i32, i32) {
    %c0_i32 = arith.constant 0 : i32
    %c0_i32_0 = arith.constant 0 : i32
    %c0_i32_1 = arith.constant 0 : i32
    return %c0_i32, %c0_i32_0 : i32, i32
  }
  func.func @transform_2(%arg0: i32) -> (i32, i32) {
    %c0_i32 = arith.constant 0 : i32
    %c0_i32_0 = arith.constant 0 : i32
    %c0_i32_1 = arith.constant 0 : i32
    return %c0_i32, %c0_i32_0 : i32, i32
  }
  func.func @transform_3(%arg0: i32) -> (i32, i32) {
    %c0_i32 = arith.constant 0 : i32
    %c0_i32_0 = arith.constant 0 : i32
    %c0_i32_1 = arith.constant 0 : i32
    return %c0_i32, %c0_i32_0 : i32, i32
  }
  func.func @transform_4(%arg0: i32) -> (i32, i32) {
    %c0_i32 = arith.constant 0 : i32
    %c0_i32_0 = arith.constant 0 : i32
    %c0_i32_1 = arith.constant 0 : i32
    return %c0_i32, %c0_i32_0 : i32, i32
  }
  func.func @transform_5(%arg0: i32) -> (i32, i32) {
    %c0_i32 = arith.constant 0 : i32
    %c0_i32_0 = arith.constant 0 : i32
    return %arg0, %c0_i32 : i32, i32
  }
}

</mosaic_0001>

<llo_original>
// kernel: tpu_custom_call.1
$region0: #{tpu_custom_call.1}
  #allocation0 [shape = 'u32[]', space=smem, size = 0x4, offset = 0x4, fixed_abs, tag = 'smem constant byte address 0x4 - core index']
  #allocation1 [shape = 'u32[144,128]{1,0:T(1,128)}', space=vmem, size = 0x12000, scoped, tag = 'internal scratch']
  %s0 = inlined_call_operand.vmem [shape: f32[16,64], index: 0, kind: input, shape index: {}]
  %s1 = inlined_call_operand.vmem [shape: f32[64,256], index: 1, kind: input, shape index: {}]
  %s2 = inlined_call_operand.vmem [shape: f32[1,256], index: 2, kind: input, shape index: {}]
  %s3 = inlined_call_operand.vmem [shape: f32[256,64], index: 3, kind: input, shape index: {}]
  %s4 = inlined_call_operand.vmem [shape: f32[1,64], index: 4, kind: input, shape index: {}]
  %s5 = inlined_call_operand.hbm [shape: f32[16,64], index: 5, kind: output, shape index: {}]
  %s6 = sld [smem:[#allocation0]]
  $region30: #{tpu_custom_call.1} parent=0
    _
  %s8 = ssub.s32 1, %s6
  %s9 = scalar_select 0, %s8, %s6
  $region1: #{tpu_custom_call.1} parent=0
    #allocation2 [shape = 'u8[8192]{0}', space=vmem, size = 0x2000, scoped, tag = 'output window, operand 0, single buffered']
    #allocation3 [shape = 's32[1]{0}', space=sflag, size = 0x4, scoped, tag = 'scoped memory for tpu_custom_call.1']
    %10 = vsyncpa [#allocation3], 0
    // Predicated region
    $region2: #{tpu_custom_call.1} parent=1 // pred_check
      _
    $region3: #{tpu_custom_call.1} parent=1 // pred_check_branch
      %12 = sbr.rel (0) target = $region5
    $region4: #{tpu_custom_call.1} parent=1 // pred_region
      _
    $region5: #{tpu_custom_call.1} parent=1 // pred_fallthru
      _
    // Predicated region
    $region6: #{tpu_custom_call.1} parent=1 // pred_check
      _
    $region7: #{tpu_custom_call.1} parent=1 // pred_check_branch
      %14 = sbr.rel (0) target = $region9
    $region8: #{tpu_custom_call.1} parent=1 // pred_region
      _
    $region9: #{tpu_custom_call.1} parent=1 // pred_fallthru
      _
    // Predicated region
    $region10: #{tpu_custom_call.1} parent=1 // pred_check
      _
    $region11: #{tpu_custom_call.1} parent=1 // pred_check_branch
      %16 = sbr.rel (0) target = $region13
    $region12: #{tpu_custom_call.1} parent=1 // pred_region
      _
    $region13: #{tpu_custom_call.1} parent=1 // pred_fallthru
      _
    // Predicated region
    $region14: #{tpu_custom_call.1} parent=1 // pred_check
      _
    $region15: #{tpu_custom_call.1} parent=1 // pred_check_branch
      %18 = sbr.rel (0) target = $region17
    $region16: #{tpu_custom_call.1} parent=1 // pred_region
      _
    $region17: #{tpu_custom_call.1} parent=1 // pred_fallthru
      _
    // Predicated region
    $region18: #{tpu_custom_call.1} parent=1 // pred_check
      _
    $region19: #{tpu_custom_call.1} parent=1 // pred_check_branch
      %20 = sbr.rel (0) target = $region21
    $region20: #{tpu_custom_call.1} parent=1 // pred_region
      _
    $region21: #{tpu_custom_call.1} parent=1 // pred_fallthru
      _
    %v21 = vld [vmem:[%s0] sm:$0xff]
    %v22 = vld [vmem:[%s0 + $0x8] sm:$0xff]
    %v23 = vld [vmem:[%s4] sm:$0x1]
    %v24 = vld [vmem:[%s1] sm:$0xff]
    %v25 = vld [vmem:[%s1 + $0x8] sm:$0xff]
    %v26 = vld [vmem:[%s1 + $0x10] sm:$0xff]
    %v27 = vld [vmem:[%s1 + $0x18] sm:$0xff]
    %v28 = vld [vmem:[%s1 + $0x20] sm:$0xff]
    %v29 = vld [vmem:[%s1 + $0x28] sm:$0xff]
    %v30 = vld [vmem:[%s1 + $0x30] sm:$0xff]
    %v31 = vld [vmem:[%s1 + $0x38] sm:$0xff]
    %v32 = vld [vmem:[%s1 + $0x40] sm:$0xff]
    %v33 = vld [vmem:[%s1 + $0x48] sm:$0xff]
    %v34 = vld [vmem:[%s1 + $0x50] sm:$0xff]
    %v35 = vld [vmem:[%s1 + $0x58] sm:$0xff]
    %v36 = vld [vmem:[%s1 + $0x60] sm:$0xff]
    %v37 = vld [vmem:[%s1 + $0x68] sm:$0xff]
    %v38 = vld [vmem:[%s1 + $0x70] sm:$0xff]
    %v39 = vld [vmem:[%s1 + $0x78] sm:$0xff]
    %v40 = vld [vmem:[%s2] sm:$0x3]
    %v42 = vlaneseq
    %v43 = vshrl.u32 %v42, 7
    %v44 = vsub.s32 0, %v43
    %v45 = vrot.slane %v40, %v44
    %v46 = vlaneseq
    %v47 = vshrl.u32 %v46, 7
    %v48 = vsub.s32 1, %v47
    %v49 = vrot.slane %v40, %v48
    %vm52 = vcmask 523264
    %v54 = vsel %vm52, %v21, 0
    %v57 = vsel %vm52, %v22, 0
    %59 = vmatprep.subr.mxu0 %v25
    %60 = vmatpush1.msra.mxu0 %v24
    %61 = vmatprep.subr.mxu0 %v27
    %62 = vmatpush1.msra.mxu0 %v26
    %63 = vmatprep.subr.mxu0 %v29
    %64 = vmatpush1.msra.mxu0 %v28
    %65 = vmatprep.subr.mxu0 %v31
    %66 = vmatpush1.msra.mxu0 %v30
    %67 = vmatprep.subr.mxu0 %v33
    %68 = vmatpush1.msra.mxu0 %v32
    %69 = vmatprep.subr.mxu0 %v35
    %70 = vmatpush1.msra.mxu0 %v34
    %71 = vmatprep.subr.mxu0 %v37
    %72 = vmatpush1.msra.mxu0 %v36
    %73 = vmatprep.subr.mxu0 %v39
    %74 = vmatpush1.msra.mxu0 %v38
    %75 = vmatprep.subr.mxu0 0.0
    %76 = vmatpush1.msra.mxu0 0.0
    %77 = vmatprep.subr.mxu0 0.0
    %78 = vmatpush1.msra.mxu0 0.0
    %79 = vmatprep.subr.mxu0 0.0
    %80 = vmatpush1.msra.mxu0 0.0
    %81 = vmatprep.subr.mxu0 0.0
    %82 = vmatpush1.msra.mxu0 0.0
    %83 = vmatprep.subr.mxu0 0.0
    %84 = vmatpush1.msra.mxu0 0.0
    %85 = vmatprep.subr.mxu0 0.0
    %86 = vmatpush1.msra.mxu0 0.0
    %87 = vmatprep.subr.mxu0 0.0
    %88 = vmatpush1.msra.mxu0 0.0
    %89 = vmatprep.subr.mxu0 0.0
    %90 = vmatpush1.msra.mxu0 0.0
    %91 = vmatprep.subr.mxu0 0.0
    %92 = vmatpush1.msra.mxu0 0.0
    %93 = vmatprep.subr.mxu0 0.0
    %94 = vmatpush1.msra.mxu0 0.0
    %95 = vmatprep.subr.mxu0 0.0
    %96 = vmatpush1.msra.mxu0 0.0
    %97 = vmatprep.subr.mxu0 0.0
    %98 = vmatpush1.msra.mxu0 0.0
    %99 = vmatprep.subr.mxu0 0.0
    %100 = vmatpush1.msra.mxu0 0.0
    %101 = vmatprep.subr.mxu0 0.0
    %102 = vmatpush1.msra.mxu0 0.0
    %103 = vmatprep.subr.mxu0 0.0
    %104 = vmatpush1.msra.mxu0 0.0
    %105 = vmatprep.subr.mxu0 0.0
    %106 = vmatpush1.msra.mxu0 0.0
    %107 = vmatprep.subr.mxu0 0.0
    %108 = vmatpush1.msra.mxu0 0.0
    %109 = vmatprep.subr.mxu0 0.0
    %110 = vmatpush1.msra.mxu0 0.0
    %111 = vmatprep.subr.mxu0 0.0
    %112 = vmatpush1.msra.mxu0 0.0
    %113 = vmatprep.subr.mxu0 0.0
    %114 = vmatpush1.msra.mxu0 0.0
    %115 = vmatprep.subr.mxu0 0.0
    %116 = vmatpush1.msra.mxu0 0.0
    %117 = vmatprep.subr.mxu0 0.0
    %118 = vmatpush1.msra.mxu0 0.0
    %119 = vmatprep.subr.mxu0 0.0
    %120 = vmatpush1.msra.mxu0 0.0
    %121 = vmatprep.subr.mxu0 0.0
    %122 = vmatpush1.msra.mxu0 0.0
    %123 = vmatprep.mubr.f32.mxu0 0.0
    %124 = vmatmul.mubr.f32.gmra.mrb[0].mxu0 %v54
    %v125 = vpop.f32.mrb[0].mxu0
    %v126 = vadd.f32 %v45, %v125
    %v127 = vpop.f32.mrb[0].mxu0
    %v128 = vadd.f32 %v49, %v127
    %129 = vmatprep.mubr.f32.mxu0 0.0
    %130 = vmatmul.mubr.f32.gmra.mrb[0].mxu0 %v57
    %v131 = vpop.f32.mrb[0].mxu0
    %v132 = vadd.f32 %v45, %v131
    %v133 = vpop.f32.mrb[0].mxu0
    %v134 = vadd.f32 %v49, %v133
    %135 = vdwg.mxu0
    %v136 = vmul.f32 %v126, 0.5
    %v137 = vmul.f32 %v128, 0.5
    %v138 = vmul.f32 %v132, 0.5
    %v139 = vmul.f32 %v134, 0.5
    %v140 = vmul.f32 %v126, 0.70710677
    %v141 = vmul.f32 %v128, 0.70710677
    %v142 = vmul.f32 %v132, 0.70710677
    %v143 = vmul.f32 %v134, 0.70710677
    %v144 = verf.f32.pop %v140
    %v145 = verf.f32.pop %v141
    %v146 = verf.f32.pop %v142
    %v147 = verf.f32.pop %v143
    %v148 = vadd.f32 %v144, 1.0
    %v149 = vadd.f32 %v145, 1.0
    %v150 = vadd.f32 %v146, 1.0
    %v151 = vadd.f32 %v147, 1.0
    %v152 = vmul.f32 %v136, %v148
    %v153 = vmul.f32 %v137, %v149
    %v154 = vmul.f32 %v138, %v150
    %v155 = vmul.f32 %v139, %v151
    %v156 = vld [vmem:[%s3] sm:$0xff]
    %v157 = vld [vmem:[%s3 + $0x8] sm:$0xff]
    %v158 = vld [vmem:[%s3 + $0x10] sm:$0xff]
    %v159 = vld [vmem:[%s3 + $0x18] sm:$0xff]
    %v160 = vld [vmem:[%s3 + $0x20] sm:$0xff]
    %v161 = vld [vmem:[%s3 + $0x28] sm:$0xff]
    %v162 = vld [vmem:[%s3 + $0x30] sm:$0xff]
    %v163 = vld [vmem:[%s3 + $0x38] sm:$0xff]
    %v164 = vld [vmem:[%s3 + $0x40] sm:$0xff]
    %v165 = vld [vmem:[%s3 + $0x48] sm:$0xff]
    %v166 = vld [vmem:[%s3 + $0x50] sm:$0xff]
    %v167 = vld [vmem:[%s3 + $0x58] sm:$0xff]
    %v168 = vld [vmem:[%s3 + $0x60] sm:$0xff]
    %v169 = vld [vmem:[%s3 + $0x68] sm:$0xff]
    %v170 = vld [vmem:[%s3 + $0x70] sm:$0xff]
    %v171 = vld [vmem:[%s3 + $0x78] sm:$0xff]
    %v172 = vld [vmem:[%s3 + $0x80] sm:$0xff]
    %v173 = vld [vmem:[%s3 + $0x88] sm:$0xff]
    %v174 = vld [vmem:[%s3 + $0x90] sm:$0xff]
    %v175 = vld [vmem:[%s3 + $0x98] sm:$0xff]
    %v176 = vld [vmem:[%s3 + $0xa0] sm:$0xff]
    %v177 = vld [vmem:[%s3 + $0xa8] sm:$0xff]
    %v178 = vld [vmem:[%s3 + $0xb0] sm:$0xff]
    %v179 = vld [vmem:[%s3 + $0xb8] sm:$0xff]
    %v180 = vld [vmem:[%s3 + $0xc0] sm:$0xff]
    %v181 = vld [vmem:[%s3 + $0xc8] sm:$0xff]
    %v182 = vld [vmem:[%s3 + $0xd0] sm:$0xff]
    %v183 = vld [vmem:[%s3 + $0xd8] sm:$0xff]
    %v184 = vld [vmem:[%s3 + $0xe0] sm:$0xff]
    %v185 = vld [vmem:[%s3 + $0xe8] sm:$0xff]
    %v186 = vld [vmem:[%s3 + $0xf0] sm:$0xff]
    %v187 = vld [vmem:[%s3 + $0xf8] sm:$0xff]
    %v189 = vlaneseq
    %v190 = vshrl.u32 %v189, 7
    %v191 = vsub.s32 0, %v190
    %v192 = vrot.slane %v23, %v191
    %194 = vmatprep.subr.mxu0 0.0
    %195 = vmatpush1.msra.mxu0 %v156
    %196 = vmatprep.subr.mxu0 0.0
    %197 = vmatpush1.msra.mxu0 %v157
    %198 = vmatprep.subr.mxu0 0.0
    %199 = vmatpush1.msra.mxu0 %v158
    %200 = vmatprep.subr.mxu0 0.0
    %201 = vmatpush1.msra.mxu0 %v159
    %202 = vmatprep.subr.mxu0 0.0
    %203 = vmatpush1.msra.mxu0 %v160
    %204 = vmatprep.subr.mxu0 0.0
    %205 = vmatpush1.msra.mxu0 %v161
    %206 = vmatprep.subr.mxu0 0.0
    %207 = vmatpush1.msra.mxu0 %v162
    %208 = vmatprep.subr.mxu0 0.0
    %209 = vmatpush1.msra.mxu0 %v163
    %210 = vmatprep.subr.mxu0 0.0
    %211 = vmatpush1.msra.mxu0 %v164
    %212 = vmatprep.subr.mxu0 0.0
    %213 = vmatpush1.msra.mxu0 %v165
    %214 = vmatprep.subr.mxu0 0.0
    %215 = vmatpush1.msra.mxu0 %v166
    %216 = vmatprep.subr.mxu0 0.0
    %217 = vmatpush1.msra.mxu0 %v167
    %218 = vmatprep.subr.mxu0 0.0
    %219 = vmatpush1.msra.mxu0 %v168
    %220 = vmatprep.subr.mxu0 0.0
    %221 = vmatpush1.msra.mxu0 %v169
    %222 = vmatprep.subr.mxu0 0.0
    %223 = vmatpush1.msra.mxu0 %v170
    %224 = vmatprep.subr.mxu0 0.0
    %225 = vmatpush1.msra.mxu0 %v171
    %226 = vmatprep.subr.mxu0 0.0
    %227 = vmatpush1.msra.mxu0 %v172
    %228 = vmatprep.subr.mxu0 0.0
    %229 = vmatpush1.msra.mxu0 %v173
    %230 = vmatprep.subr.mxu0 0.0
    %231 = vmatpush1.msra.mxu0 %v174
    %232 = vmatprep.subr.mxu0 0.0
    %233 = vmatpush1.msra.mxu0 %v175
    %234 = vmatprep.subr.mxu0 0.0
    %235 = vmatpush1.msra.mxu0 %v176
    %236 = vmatprep.subr.mxu0 0.0
    %237 = vmatpush1.msra.mxu0 %v177
    %238 = vmatprep.subr.mxu0 0.0
    %239 = vmatpush1.msra.mxu0 %v178
    %240 = vmatprep.subr.mxu0 0.0
    %241 = vmatpush1.msra.mxu0 %v179
    %242 = vmatprep.subr.mxu0 0.0
    %243 = vmatpush1.msra.mxu0 %v180
    %244 = vmatprep.subr.mxu0 0.0
    %245 = vmatpush1.msra.mxu0 %v181
    %246 = vmatprep.subr.mxu0 0.0
    %247 = vmatpush1.msra.mxu0 %v182
    %248 = vmatprep.subr.mxu0 0.0
    %249 = vmatpush1.msra.mxu0 %v183
    %250 = vmatprep.subr.mxu0 0.0
    %251 = vmatpush1.msra.mxu0 %v184
    %252 = vmatprep.subr.mxu0 0.0
    %253 = vmatpush1.msra.mxu0 %v185
    %254 = vmatprep.subr.mxu0 0.0
    %255 = vmatpush1.msra.mxu0 %v186
    %256 = vmatprep.subr.mxu0 0.0
    %257 = vmatpush1.msra.mxu0 %v187
    %258 = vmatprep.mubr.f32.mxu0 %v153
    %259 = vmatmul.mubr.f32.gmra.mrb[0].mxu0 %v152
    %v260 = vpop.f32.mrb[0].mxu0
    %v261 = vadd.f32 %v192, %v260
    %v262 = vpop.f32.mrb[0].mxu0
    %263 = vmatprep.mubr.f32.mxu0 %v155
    %264 = vmatmul.mubr.f32.gmra.mrb[0].mxu0 %v154
    %v265 = vpop.f32.mrb[0].mxu0
    %v266 = vadd.f32 %v192, %v265
    %v267 = vpop.f32.mrb[0].mxu0
    %268 = vdwg.mxu0
    %269 = vst.msk [vmem:[#allocation2] sm:$0xff] %vm52, %v261
    %270 = vst.msk [vmem:[#allocation2 + $0x8] sm:$0xff] %vm52, %v266
    // Predicated region
    $region22: #{tpu_custom_call.1} parent=1 // pred_check
      _
    $region23: #{tpu_custom_call.1} parent=1 // pred_check_branch
      %272 = sbr.rel (0) target = $region25
    $region24: #{tpu_custom_call.1} parent=1 // pred_region
      %s274 = ssub.s32 256, 256
      %275 = vsyncadd [#allocation3], %s274
      %s276 = sshll.u32 [#allocation2], 4
      %s277 = int_to_ptr.vmem [resolvable:$true] %s276
      %282 = dma.vmem_to_hbm [thread:$0]  %s277, 256, %s5, [#allocation3], 128, 128, 8
    $region25: #{tpu_custom_call.1} parent=1 // pred_fallthru
      _
    // Predicated region
    $region26: #{tpu_custom_call.1} parent=1 // pred_check
      _
    $region27: #{tpu_custom_call.1} parent=1 // pred_check_branch
      %284 = sbr.rel (0) target = $region29
    $region28: #{tpu_custom_call.1} parent=1 // pred_region
      %285 = dma.done [#allocation3], 256
    $region29: #{tpu_custom_call.1} parent=1 // pred_fallthru
      _
    %286 = vsyncpa [#allocation3], 1

</llo_original>
